<compile_context>
chip_gen: v7x
topology: tpu7x:2x2x1
jax: 0.10.0
libtpu: 0.0.40
codegen_flags: <defaults>
</compile_context>

<pallas_src>
import jax
import jax.numpy as jnp
from jax.experimental import pallas as pl
from jax.experimental.pallas import tpu as pltpu


def dsa_kernel(x_ref, wa_ref, wres_ref, lng_ref, lnb_ref, wup_ref,
               wskr_ref, wsks0_ref, wsks1_ref, o_ref):
    x = x_ref[0]                                   # (C, HW) f32
    Cr = lng_ref.shape[0]
    Crp = (wa_ref.shape[0] - 8) // 3               # sublane-padded Cr

    # MXU operand dtype follows the projection weights (f32 or bf16).
    x_mx = x.astype(wa_ref.dtype)

    # ---- fused projection #1: q_right / v_right / q_left / v_left ----
    # Host-side row layout of w_a keeps every slice start 8-aligned:
    #   [0:8)              q_right (row 0 real, rows 1..7 zero pad)
    #   [8:8+Crp)          v_right (first Cr rows real)
    #   [8+Crp:8+2Crp)     q_left
    #   [8+2Crp:8+3Crp)    v_left
    proj = jnp.dot(wa_ref[...], x_mx, preferred_element_type=jnp.float32)
    q_r   = proj[0:1]                              # (1,  HW)
    v_r   = proj[8:8 + Cr]                         # (Cr, HW)
    g     = proj[8 + Crp:8 + Crp + Cr]             # (Cr, HW)
    theta = proj[8 + 2 * Crp:8 + 2 * Crp + Cr]     # (Cr, HW)

    # ---------------- channel attention ----------------
    # softmax over HW folded into the context reduction (no normalized map).
    q_r = q_r - jnp.max(q_r, axis=1, keepdims=True)
    e_q = jnp.exp(q_r)                                                 # (1, HW)
    ctx = (jnp.sum(v_r * e_q, axis=1, keepdims=True)
           * pl.reciprocal(jnp.sum(e_q, axis=1, keepdims=True), approx=True))  # (Cr,1)

    # LayerNorm over the Cr values (normalized_shape=[Cr,1,1]) + ReLU + 1x1 up.
    mu = jnp.mean(ctx, axis=0, keepdims=True)
    var = jnp.mean((ctx - mu) ** 2, axis=0, keepdims=True)
    ln = (ctx - mu) * jax.lax.rsqrt(var + 1e-5) * lng_ref[...] + lnb_ref[...]
    ln = jnp.maximum(ln, 0.0)
    ch = jax.nn.sigmoid(
        jnp.dot(wup_ref[...], ln, preferred_element_type=jnp.float32))  # (C, 1)

    # ---------------- spatial attention ----------------
    gmax = jnp.max(g, axis=1, keepdims=True)                           # (Cr,1) adaptive max pool
    gmax = gmax - jnp.max(gmax, axis=0, keepdims=True)
    e_g = jnp.exp(gmax)
    avg = e_g * pl.reciprocal(jnp.sum(e_g, axis=0, keepdims=True), approx=True)  # softmax over channels
    sp = jax.nn.sigmoid(jnp.sum(theta * avg, axis=0, keepdims=True))   # (1, HW)

    # ---------------- dsa fusion (algebraically simplified) ----------------
    # sequence = ch*sp, parallel = ch + sp  (never materialized as (C,HW))
    mean_sp = jnp.mean(sp, axis=1, keepdims=True)                      # (1,1)
    pooled = ch * mean_sp + ch + mean_sp                               # == mean_HW(seq+par), (C,1)

    red = jnp.maximum(
        jnp.dot(wskr_ref[...], pooled, preferred_element_type=jnp.float32), 0.0)  # (Cr,1), BN(eval)=id
    z0 = jnp.dot(wsks0_ref[...], red, preferred_element_type=jnp.float32)          # path 0 (sequence)
    z1 = jnp.dot(wsks1_ref[...], red, preferred_element_type=jnp.float32)          # path 1 (parallel)
    m = jnp.maximum(z0, z1)
    e0 = jnp.exp(z0 - m)
    e1 = jnp.exp(z1 - m)
    inv = pl.reciprocal(e0 + e1, approx=True)
    a0 = e0 * inv
    a1 = e1 * inv                                                      # (C,1) each
    coef = ch * a0 + a1                                                # (C,1) ∈ (0, ~1]

    # ---------------- final HW softmax folded into the aggregation ----------------
    # sq_pr = sp*(a0*ch + a1) + a1*ch; the a1*ch term is constant over HW so it
    # cancels in the softmax.  logits ∈ (0, ~1] -> no row-max subtraction needed.
    e_l = jnp.exp(sp * coef)                                           # (C, HW)
    # value projection deferred here so proj's rows are dead before it goes live.
    value = jnp.maximum(
        jnp.dot(wres_ref[...], x_mx, preferred_element_type=jnp.float32), 0.0)  # (C, HW)
    num = jnp.sum(value * e_l, axis=1, keepdims=True)                  # (C,1)
    den = jnp.sum(e_l, axis=1, keepdims=True)                          # (C,1)
    agg = num * pl.reciprocal(den, approx=True)
    o_ref[0] = x + agg                                                 # broadcast over HW


def dsa_forward(x_nchw, params, *, proj_dtype=jnp.float32):
    B, C, H, W = x_nchw.shape
    HW = H * W
    Cr = params["w_v_right"].shape[1]
    Crp = max(8, ((Cr + 7) // 8) * 8)
    x = x_nchw.reshape(B, C, HW)                      # free reshape — no HBM transpose

    def pad_rows(w_t, rows):                          # zero-pad (r, C) -> (rows, C)
        return jnp.pad(w_t, ((0, rows - w_t.shape[0]), (0, 0)))

    # Fused, sublane-aligned weight stack for the first projection.
    w_a = jnp.concatenate([
        pad_rows(params["w_q_right"].T, 8),           # (8,   C) row 0 real
        pad_rows(params["w_v_right"].T, Crp),         # (Crp, C)
        pad_rows(params["w_q_left"].T, Crp),          # (Crp, C)
        pad_rows(params["w_v_left"].T, Crp),          # (Crp, C)
    ], axis=0).astype(proj_dtype)                     # (8+3*Crp, C)
    w_res = params["w_res"].T.astype(proj_dtype)      # (C, C), used late in the kernel

    ln_g = params["ln_gamma"].reshape(Cr, 1)
    ln_b = params["ln_beta"].reshape(Cr, 1)
    wup_t = params["w_up"].T                          # (C, Cr)
    wskr_t = params["w_sk_reduce"].T                  # (Cr, C)
    wsks0_t = params["w_sk_select"][:, :C].T          # (C, Cr) path 0
    wsks1_t = params["w_sk_select"][:, C:].T          # (C, Cr) path 1

    weights = [w_a, w_res, ln_g, ln_b, wup_t, wskr_t, wsks0_t, wsks1_t]

    # Explicit VMEM budget: x/out blocks (double-buffered) + proj + the two (C,HW)
    # tail temporaries + weights + slack; clamped to a range safe on all chips.
    wbytes = sum(int(w.size) * w.dtype.itemsize for w in weights)
    est = (4 * C * HW * 4               # x in + out, double-buffered
           + (8 + 3 * Crp) * HW * 4     # proj
           + 2 * C * HW * 4             # value + e_l
           + 2 * wbytes
           + (2 << 20))                 # slack
    vmem_limit = int(min(max(est, 32 << 20), 100 << 20))

    def wspec(w):
        return pl.BlockSpec(w.shape, lambda b: (0, 0))

    out = pl.pallas_call(
        dsa_kernel,
        out_shape=jax.ShapeDtypeStruct((B, C, HW), jnp.float32),
        grid_spec=pltpu.PrefetchScalarGridSpec(
            num_scalar_prefetch=0,
            grid=(B,),
            in_specs=[pl.BlockSpec((1, C, HW), lambda b: (b, 0, 0))]
                     + [wspec(w) for w in weights],
            out_specs=pl.BlockSpec((1, C, HW), lambda b: (b, 0, 0)),
        ),
        compiler_params=pltpu.CompilerParams(
            dimension_semantics=("parallel",),        # batches independent -> megacore on v7x
            vmem_limit_bytes=vmem_limit,
        ),
    )(x, *weights)

    return out.reshape(B, C, H, W)                    # free reshape back to NCHW


# ---------------- pure-JAX reference (NCHW, mirrors the PyTorch code) ----------------
def _conv1x1(x, w):  # x: (B, Cin, H, W), w stored (Cin, Cout)
    return jnp.einsum("bihw,io->bohw", x, w, precision=jax.lax.Precision.HIGHEST)


def dsa_ref(x, p):
    B, C, H, W = x.shape
    HW = H * W
    Cr = p["w_v_right"].shape[1]
    # channel attention
    input_x = _conv1x1(x, p["w_v_right"]).reshape(B, Cr, HW)
    cm = _conv1x1(x, p["w_q_right"]).reshape(B, 1, HW)
    cm = jax.nn.softmax(cm, axis=2).transpose(0, 2, 1)                    # (B, HW, 1)
    context = jnp.matmul(input_x, cm).reshape(B, Cr, 1, 1)
    mu = jnp.mean(context, axis=(1, 2, 3), keepdims=True)
    var = jnp.mean((context - mu) ** 2, axis=(1, 2, 3), keepdims=True)
    ln = (context - mu) / jnp.sqrt(var + 1e-5)
    ln = ln * p["ln_gamma"].reshape(1, Cr, 1, 1) + p["ln_beta"].reshape(1, Cr, 1, 1)
    ln = jnp.maximum(ln, 0.0)
    ch = jax.nn.sigmoid(_conv1x1(ln, p["w_up"]))                          # (B, C, 1, 1)
    # spatial attention
    g = _conv1x1(x, p["w_q_left"])
    gmax = jnp.max(g, axis=(2, 3), keepdims=True)
    avg = jax.nn.softmax(gmax, axis=1).reshape(B, 1, Cr)
    theta = _conv1x1(x, p["w_v_left"]).reshape(B, Cr, HW)
    sp = jax.nn.sigmoid(jnp.matmul(avg, theta))                           # (B, 1, HW)
    # fusion
    ch_r = ch.reshape(B, C, 1)
    sequence = jnp.matmul(ch_r, sp).reshape(B, C, H, W)
    parallel = (sp + ch_r).reshape(B, C, H, W)
    stack = jnp.stack([sequence, parallel], axis=1)                       # (B, 2, C, H, W)
    pooled = stack.sum(1).mean(axis=(2, 3), keepdims=True)                # (B, C, 1, 1)
    red = jnp.maximum(_conv1x1(pooled, p["w_sk_reduce"]), 0.0)            # BN(eval)=identity
    sel = _conv1x1(red, p["w_sk_select"]).reshape(B, 2, C, 1, 1)
    sk_attn = jax.nn.softmax(sel, axis=1)
    sq_pr = (stack * sk_attn).sum(axis=1).reshape(B, C, HW)
    self_attn = jax.nn.softmax(sq_pr, axis=2).reshape(B, C, H, W)
    value = jnp.maximum(_conv1x1(x, p["w_res"]), 0.0)
    agg = (value * self_attn).reshape(B, C, HW).sum(axis=2).reshape(B, C, 1, 1)
    return agg + x


def init_params(key, in_channels, ratio=2):
    C = in_channels
    Cr = in_channels // ratio
    keys = jax.random.split(key, 8)

    def kaiming(k, cin, cout):  # fan_in kaiming for 1x1 conv, stored as (Cin, Cout)
        std = (2.0 / cin) ** 0.5
        return (jax.random.normal(k, (cin, cout), dtype=jnp.float32) * std)

    return {
        "w_q_right": kaiming(keys[0], C, 1),
        "w_v_right": kaiming(keys[1], C, Cr),
        "ln_gamma": jnp.ones((1, Cr), jnp.float32),
        "ln_beta": jnp.zeros((1, Cr), jnp.float32),
        "w_up": kaiming(keys[2], Cr, C),
        "w_q_left": kaiming(keys[3], C, Cr),
        "w_v_left": kaiming(keys[4], C, Cr),
        "w_sk_reduce": kaiming(keys[5], C, Cr),
        "w_sk_select": kaiming(keys[6], Cr, 2 * C),   # first C cols = path 0, next C = path 1
        "w_res": kaiming(keys[7], C, C),
    }


if __name__ == "__main__":
    key = jax.random.PRNGKey(0)
    k_x, k_p = jax.random.split(key)

    B, C, H, W = 2, 4, 16, 16
    x = jax.random.normal(k_x, (B, C, H, W), dtype=jnp.float32)
    params = init_params(k_p, C, ratio=2)

    out = jax.block_until_ready(dsa_forward(x, params))
    ref = jax.block_until_ready(dsa_ref(x, params))

    assert out.shape == (B, C, H, W)
    # 2e-3 tolerance is intentional: approx (EUP) reciprocals replace the exact
    # softmax/path-select divides.  (bf16 projection, if enabled via proj_dtype,
    # must be re-validated against this budget.)
    assert jnp.allclose(out, ref, rtol=2e-3, atol=2e-3), (
        f"max abs diff {jnp.max(jnp.abs(out - ref))}")
    print("KERNEL_OK")
</pallas_src>

<mosaic_0001>
module attributes {stable_mosaic.version = 11 : i64} {
  func.func @dsa_kernel(%arg0: i32, %arg1: memref<1x4x256xf32, #tpu.memory_space<vmem>>, %arg2: memref<32x4xf32, #tpu.memory_space<vmem>>, %arg3: memref<4x4xf32, #tpu.memory_space<vmem>>, %arg4: memref<2x1xf32, #tpu.memory_space<vmem>>, %arg5: memref<2x1xf32, #tpu.memory_space<vmem>>, %arg6: memref<4x2xf32, #tpu.memory_space<vmem>>, %arg7: memref<2x4xf32, #tpu.memory_space<vmem>>, %arg8: memref<4x2xf32, #tpu.memory_space<vmem>>, %arg9: memref<4x2xf32, #tpu.memory_space<vmem>>, %arg10: memref<1x4x256xf32, #tpu.memory_space<vmem>>) attributes {dimension_semantics = [#tpu.dimension_semantics<parallel>], iteration_bounds = array<i64: 2>, scalar_prefetch = 0 : i64, scratch_operands = 0 : i64, tpu.core_type = #tpu.core_type<tc>, window_params = [{transform_indices = @transform_0, window_bounds = array<i64: 1, 4, 256>}, {pipeline_mode = #tpu.pipeline_mode<synchronous>, transform_indices = @transform_1, window_bounds = array<i64: 32, 4>}, {pipeline_mode = #tpu.pipeline_mode<synchronous>, transform_indices = @transform_2, window_bounds = array<i64: 4, 4>}, {pipeline_mode = #tpu.pipeline_mode<synchronous>, transform_indices = @transform_3, window_bounds = array<i64: 2, 1>}, {pipeline_mode = #tpu.pipeline_mode<synchronous>, transform_indices = @transform_4, window_bounds = array<i64: 2, 1>}, {pipeline_mode = #tpu.pipeline_mode<synchronous>, transform_indices = @transform_5, window_bounds = array<i64: 4, 2>}, {pipeline_mode = #tpu.pipeline_mode<synchronous>, transform_indices = @transform_6, window_bounds = array<i64: 2, 4>}, {pipeline_mode = #tpu.pipeline_mode<synchronous>, transform_indices = @transform_7, window_bounds = array<i64: 4, 2>}, {pipeline_mode = #tpu.pipeline_mode<synchronous>, transform_indices = @transform_8, window_bounds = array<i64: 4, 2>}, {transform_indices = @transform_9, window_bounds = array<i64: 1, 4, 256>}]} {
    %c0 = arith.constant 0 : index
    %c0_0 = arith.constant 0 : index
    %c0_1 = arith.constant 0 : index
    %0 = vector.load %arg1[%c0, %c0_0, %c0_1] : memref<1x4x256xf32, #tpu.memory_space<vmem>>, vector<1x4x256xf32>
    %1 = vector.shape_cast %0 : vector<1x4x256xf32> to vector<4x256xf32>
    %c0_2 = arith.constant 0 : index
    %c0_3 = arith.constant 0 : index
    %2 = vector.load %arg2[%c0_2, %c0_3] : memref<32x4xf32, #tpu.memory_space<vmem>>, vector<32x4xf32>
    %cst = arith.constant dense<0.000000e+00> : vector<32x256xf32>
    %3 = tpu.matmul %2, %1, %cst {dimension_numbers = #tpu.dot_dimension_numbers<[1], [0], [0], [1], [0, 0, 1, 1], [], []>} : vector<32x4xf32>, vector<4x256xf32>, vector<32x256xf32> -> vector<32x256xf32>
    %4 = vector.extract_strided_slice %3 {offsets = [0, 0], sizes = [1, 256], strides = [1, 1]} : vector<32x256xf32> to vector<1x256xf32>
    %5 = vector.extract_strided_slice %3 {offsets = [8, 0], sizes = [2, 256], strides = [1, 1]} : vector<32x256xf32> to vector<2x256xf32>
    %6 = vector.extract_strided_slice %3 {offsets = [16, 0], sizes = [2, 256], strides = [1, 1]} : vector<32x256xf32> to vector<2x256xf32>
    %7 = vector.extract_strided_slice %3 {offsets = [24, 0], sizes = [2, 256], strides = [1, 1]} : vector<32x256xf32> to vector<2x256xf32>
    %cst_4 = arith.constant dense<0xFF800000> : vector<1xf32>
    %8 = vector.multi_reduction <maximumf>, %4, %cst_4 [1] : vector<1x256xf32> to vector<1xf32>
    %9 = vector.shape_cast %8 : vector<1xf32> to vector<1x1xf32>
    %10 = vector.broadcast %9 : vector<1x1xf32> to vector<1x256xf32>
    %11 = arith.subf %4, %10 : vector<1x256xf32>
    %12 = math.exp %11 : vector<1x256xf32>
    %13 = vector.broadcast %12 : vector<1x256xf32> to vector<2x256xf32>
    %14 = arith.mulf %5, %13 : vector<2x256xf32>
    %cst_5 = arith.constant dense<0.000000e+00> : vector<2xf32>
    %15 = vector.multi_reduction <add>, %14, %cst_5 [1] : vector<2x256xf32> to vector<2xf32>
    %16 = vector.shape_cast %15 : vector<2xf32> to vector<2x1xf32>
    %cst_6 = arith.constant dense<0.000000e+00> : vector<1xf32>
    %17 = vector.multi_reduction <add>, %12, %cst_6 [1] : vector<1x256xf32> to vector<1xf32>
    %18 = vector.shape_cast %17 : vector<1xf32> to vector<1x1xf32>
    %19 = tpu.reciprocal %18 {approx = true} : vector<1x1xf32> -> vector<1x1xf32>
    %20 = vector.broadcast %19 : vector<1x1xf32> to vector<2x1xf32>
    %21 = arith.mulf %16, %20 : vector<2x1xf32>
    %cst_7 = arith.constant dense<0.000000e+00> : vector<1xf32>
    %22 = vector.multi_reduction <add>, %21, %cst_7 [0] : vector<2x1xf32> to vector<1xf32>
    %23 = vector.shape_cast %22 : vector<1xf32> to vector<1x1xf32>
    %cst_8 = arith.constant 2.000000e+00 : f32
    %24 = vector.broadcast %cst_8 : f32 to vector<1x1xf32>
    %25 = arith.divf %23, %24 : vector<1x1xf32>
    %26 = vector.broadcast %25 : vector<1x1xf32> to vector<2x1xf32>
    %27 = arith.subf %21, %26 : vector<2x1xf32>
    %28 = arith.mulf %27, %27 : vector<2x1xf32>
    %cst_9 = arith.constant dense<0.000000e+00> : vector<1xf32>
    %29 = vector.multi_reduction <add>, %28, %cst_9 [0] : vector<2x1xf32> to vector<1xf32>
    %30 = vector.shape_cast %29 : vector<1xf32> to vector<1x1xf32>
    %cst_10 = arith.constant 2.000000e+00 : f32
    %31 = vector.broadcast %cst_10 : f32 to vector<1x1xf32>
    %32 = arith.divf %30, %31 : vector<1x1xf32>
    %33 = vector.broadcast %25 : vector<1x1xf32> to vector<2x1xf32>
    %34 = arith.subf %21, %33 : vector<2x1xf32>
    %cst_11 = arith.constant 9.99999974E-6 : f32
    %35 = vector.broadcast %cst_11 : f32 to vector<1x1xf32>
    %36 = arith.addf %32, %35 : vector<1x1xf32>
    %37 = math.rsqrt %36 : vector<1x1xf32>
    %38 = vector.broadcast %37 : vector<1x1xf32> to vector<2x1xf32>
    %39 = arith.mulf %34, %38 : vector<2x1xf32>
    %c0_12 = arith.constant 0 : index
    %c0_13 = arith.constant 0 : index
    %40 = vector.load %arg4[%c0_12, %c0_13] : memref<2x1xf32, #tpu.memory_space<vmem>>, vector<2x1xf32>
    %41 = arith.mulf %39, %40 : vector<2x1xf32>
    %c0_14 = arith.constant 0 : index
    %c0_15 = arith.constant 0 : index
    %42 = vector.load %arg5[%c0_14, %c0_15] : memref<2x1xf32, #tpu.memory_space<vmem>>, vector<2x1xf32>
    %43 = arith.addf %41, %42 : vector<2x1xf32>
    %cst_16 = arith.constant 0.000000e+00 : f32
    %44 = vector.broadcast %cst_16 : f32 to vector<2x1xf32>
    %45 = arith.maximumf %43, %44 : vector<2x1xf32>
    %c0_17 = arith.constant 0 : index
    %c0_18 = arith.constant 0 : index
    %46 = vector.load %arg6[%c0_17, %c0_18] : memref<4x2xf32, #tpu.memory_space<vmem>>, vector<4x2xf32>
    %cst_19 = arith.constant dense<0.000000e+00> : vector<4x1xf32>
    %47 = tpu.matmul %46, %45, %cst_19 {dimension_numbers = #tpu.dot_dimension_numbers<[1], [0], [0], [1], [0, 0, 1, 1], [], []>} : vector<4x2xf32>, vector<2x1xf32>, vector<4x1xf32> -> vector<4x1xf32>
    %48 = arith.negf %47 : vector<4x1xf32>
    %49 = math.exp %48 : vector<4x1xf32>
    %cst_20 = arith.constant 1.000000e+00 : f32
    %50 = vector.broadcast %cst_20 : f32 to vector<4x1xf32>
    %51 = arith.addf %50, %49 : vector<4x1xf32>
    %52 = arith.divf %50, %51 : vector<4x1xf32>
    %cst_21 = arith.constant dense<0xFF800000> : vector<2xf32>
    %53 = vector.multi_reduction <maximumf>, %6, %cst_21 [1] : vector<2x256xf32> to vector<2xf32>
    %54 = vector.shape_cast %53 : vector<2xf32> to vector<2x1xf32>
    %cst_22 = arith.constant dense<0xFF800000> : vector<1xf32>
    %55 = vector.multi_reduction <maximumf>, %54, %cst_22 [0] : vector<2x1xf32> to vector<1xf32>
    %56 = vector.shape_cast %55 : vector<1xf32> to vector<1x1xf32>
    %57 = vector.broadcast %56 : vector<1x1xf32> to vector<2x1xf32>
    %58 = arith.subf %54, %57 : vector<2x1xf32>
    %59 = math.exp %58 : vector<2x1xf32>
    %cst_23 = arith.constant dense<0.000000e+00> : vector<1xf32>
    %60 = vector.multi_reduction <add>, %59, %cst_23 [0] : vector<2x1xf32> to vector<1xf32>
    %61 = vector.shape_cast %60 : vector<1xf32> to vector<1x1xf32>
    %62 = tpu.reciprocal %61 {approx = true} : vector<1x1xf32> -> vector<1x1xf32>
    %63 = vector.broadcast %62 : vector<1x1xf32> to vector<2x1xf32>
    %64 = arith.mulf %59, %63 : vector<2x1xf32>
    %65 = vector.broadcast %64 : vector<2x1xf32> to vector<2x256xf32>
    %66 = arith.mulf %7, %65 : vector<2x256xf32>
    %cst_24 = arith.constant dense<0.000000e+00> : vector<256xf32>
    %67 = vector.multi_reduction <add>, %66, %cst_24 [0] : vector<2x256xf32> to vector<256xf32>
    %68 = vector.shape_cast %67 : vector<256xf32> to vector<1x256xf32>
    %69 = arith.negf %68 : vector<1x256xf32>
    %70 = math.exp %69 : vector<1x256xf32>
    %cst_25 = arith.constant 1.000000e+00 : f32
    %71 = vector.broadcast %cst_25 : f32 to vector<1x256xf32>
    %72 = arith.addf %71, %70 : vector<1x256xf32>
    %73 = arith.divf %71, %72 : vector<1x256xf32>
    %cst_26 = arith.constant dense<0.000000e+00> : vector<1xf32>
    %74 = vector.multi_reduction <add>, %73, %cst_26 [1] : vector<1x256xf32> to vector<1xf32>
    %75 = vector.shape_cast %74 : vector<1xf32> to vector<1x1xf32>
    %cst_27 = arith.constant 2.560000e+02 : f32
    %76 = vector.broadcast %cst_27 : f32 to vector<1x1xf32>
    %77 = arith.divf %75, %76 : vector<1x1xf32>
    %78 = vector.broadcast %77 : vector<1x1xf32> to vector<4x1xf32>
    %79 = arith.mulf %52, %78 : vector<4x1xf32>
    %80 = arith.addf %79, %52 : vector<4x1xf32>
    %81 = vector.broadcast %77 : vector<1x1xf32> to vector<4x1xf32>
    %82 = arith.addf %80, %81 : vector<4x1xf32>
    %c0_28 = arith.constant 0 : index
    %c0_29 = arith.constant 0 : index
    %83 = vector.load %arg7[%c0_28, %c0_29] : memref<2x4xf32, #tpu.memory_space<vmem>>, vector<2x4xf32>
    %cst_30 = arith.constant dense<0.000000e+00> : vector<2x1xf32>
    %84 = tpu.matmul %83, %82, %cst_30 {dimension_numbers = #tpu.dot_dimension_numbers<[1], [0], [0], [1], [0, 0, 1, 1], [], []>} : vector<2x4xf32>, vector<4x1xf32>, vector<2x1xf32> -> vector<2x1xf32>
    %cst_31 = arith.constant 0.000000e+00 : f32
    %85 = vector.broadcast %cst_31 : f32 to vector<2x1xf32>
    %86 = arith.maximumf %84, %85 : vector<2x1xf32>
    %c0_32 = arith.constant 0 : index
    %c0_33 = arith.constant 0 : index
    %87 = vector.load %arg8[%c0_32, %c0_33] : memref<4x2xf32, #tpu.memory_space<vmem>>, vector<4x2xf32>
    %cst_34 = arith.constant dense<0.000000e+00> : vector<4x1xf32>
    %88 = tpu.matmul %87, %86, %cst_34 {dimension_numbers = #tpu.dot_dimension_numbers<[1], [0], [0], [1], [0, 0, 1, 1], [], []>} : vector<4x2xf32>, vector<2x1xf32>, vector<4x1xf32> -> vector<4x1xf32>
    %c0_35 = arith.constant 0 : index
    %c0_36 = arith.constant 0 : index
    %89 = vector.load %arg9[%c0_35, %c0_36] : memref<4x2xf32, #tpu.memory_space<vmem>>, vector<4x2xf32>
    %cst_37 = arith.constant dense<0.000000e+00> : vector<4x1xf32>
    %90 = tpu.matmul %89, %86, %cst_37 {dimension_numbers = #tpu.dot_dimension_numbers<[1], [0], [0], [1], [0, 0, 1, 1], [], []>} : vector<4x2xf32>, vector<2x1xf32>, vector<4x1xf32> -> vector<4x1xf32>
    %91 = arith.maximumf %88, %90 : vector<4x1xf32>
    %92 = arith.subf %88, %91 : vector<4x1xf32>
    %93 = math.exp %92 : vector<4x1xf32>
    %94 = arith.subf %90, %91 : vector<4x1xf32>
    %95 = math.exp %94 : vector<4x1xf32>
    %96 = arith.addf %93, %95 : vector<4x1xf32>
    %97 = tpu.reciprocal %96 {approx = true} : vector<4x1xf32> -> vector<4x1xf32>
    %98 = arith.mulf %93, %97 : vector<4x1xf32>
    %99 = arith.mulf %95, %97 : vector<4x1xf32>
    %100 = arith.mulf %52, %98 : vector<4x1xf32>
    %101 = arith.addf %100, %99 : vector<4x1xf32>
    %102 = vector.broadcast %73 : vector<1x256xf32> to vector<4x256xf32>
    %103 = vector.broadcast %101 : vector<4x1xf32> to vector<4x256xf32>
    %104 = arith.mulf %102, %103 : vector<4x256xf32>
    %105 = math.exp %104 : vector<4x256xf32>
    %c0_38 = arith.constant 0 : index
    %c0_39 = arith.constant 0 : index
    %106 = vector.load %arg3[%c0_38, %c0_39] : memref<4x4xf32, #tpu.memory_space<vmem>>, vector<4x4xf32>
    %cst_40 = arith.constant dense<0.000000e+00> : vector<4x256xf32>
    %107 = tpu.matmul %106, %1, %cst_40 {dimension_numbers = #tpu.dot_dimension_numbers<[1], [0], [0], [1], [0, 0, 1, 1], [], []>} : vector<4x4xf32>, vector<4x256xf32>, vector<4x256xf32> -> vector<4x256xf32>
    %cst_41 = arith.constant 0.000000e+00 : f32
    %108 = vector.broadcast %cst_41 : f32 to vector<4x256xf32>
    %109 = arith.maximumf %107, %108 : vector<4x256xf32>
    %110 = arith.mulf %109, %105 : vector<4x256xf32>
    %cst_42 = arith.constant dense<0.000000e+00> : vector<4xf32>
    %111 = vector.multi_reduction <add>, %110, %cst_42 [1] : vector<4x256xf32> to vector<4xf32>
    %112 = vector.shape_cast %111 : vector<4xf32> to vector<4x1xf32>
    %cst_43 = arith.constant dense<0.000000e+00> : vector<4xf32>
    %113 = vector.multi_reduction <add>, %105, %cst_43 [1] : vector<4x256xf32> to vector<4xf32>
    %114 = vector.shape_cast %113 : vector<4xf32> to vector<4x1xf32>
    %115 = tpu.reciprocal %114 {approx = true} : vector<4x1xf32> -> vector<4x1xf32>
    %116 = arith.mulf %112, %115 : vector<4x1xf32>
    %117 = vector.broadcast %116 : vector<4x1xf32> to vector<4x256xf32>
    %118 = arith.addf %1, %117 : vector<4x256xf32>
    %c0_44 = arith.constant 0 : index
    %c0_45 = arith.constant 0 : index
    %c0_46 = arith.constant 0 : index
    %119 = vector.load %arg10[%c0_44, %c0_45, %c0_46] : memref<1x4x256xf32, #tpu.memory_space<vmem>>, vector<1x4x256xf32>
    %120 = vector.shape_cast %119 : vector<1x4x256xf32> to vector<4x256xf32>
    %121 = vector.shape_cast %118 : vector<4x256xf32> to vector<1x4x256xf32>
    tpu.vector_store %arg10[%c0_44, %c0_45, %c0_46], %121 {strides = array<i32>} : memref<1x4x256xf32, #tpu.memory_space<vmem>>, vector<1x4x256xf32>,
    return
  }
  func.func @transform_0(%arg0: i32) -> (i32, i32, i32) {
    %c0_i32 = arith.constant 0 : i32
    %c0_i32_0 = arith.constant 0 : i32
    %c0_i32_1 = arith.constant 0 : i32
    return %arg0, %c0_i32, %c0_i32_0 : i32, i32, i32
  }
  func.func @transform_1(%arg0: i32) -> (i32, i32) {
    %c0_i32 = arith.constant 0 : i32
    %c0_i32_0 = arith.constant 0 : i32
    %c0_i32_1 = arith.constant 0 : i32
    return %c0_i32, %c0_i32_0 : i32, i32
  }
  func.func @transform_2(%arg0: i32) -> (i32, i32) {
    %c0_i32 = arith.constant 0 : i32
    %c0_i32_0 = arith.constant 0 : i32
    %c0_i32_1 = arith.constant 0 : i32
    return %c0_i32, %c0_i32_0 : i32, i32
  }
  func.func @transform_3(%arg0: i32) -> (i32, i32) {
    %c0_i32 = arith.constant 0 : i32
    %c0_i32_0 = arith.constant 0 : i32
    %c0_i32_1 = arith.constant 0 : i32
    return %c0_i32, %c0_i32_0 : i32, i32
  }
  func.func @transform_4(%arg0: i32) -> (i32, i32) {
    %c0_i32 = arith.constant 0 : i32
    %c0_i32_0 = arith.constant 0 : i32
    %c0_i32_1 = arith.constant 0 : i32
    return %c0_i32, %c0_i32_0 : i32, i32
  }
  func.func @transform_5(%arg0: i32) -> (i32, i32) {
    %c0_i32 = arith.constant 0 : i32
    %c0_i32_0 = arith.constant 0 : i32
    %c0_i32_1 = arith.constant 0 : i32
    return %c0_i32, %c0_i32_0 : i32, i32
  }
  func.func @transform_6(%arg0: i32) -> (i32, i32) {
    %c0_i32 = arith.constant 0 : i32
    %c0_i32_0 = arith.constant 0 : i32
    %c0_i32_1 = arith.constant 0 : i32
    return %c0_i32, %c0_i32_0 : i32, i32
  }
  func.func @transform_7(%arg0: i32) -> (i32, i32) {
    %c0_i32 = arith.constant 0 : i32
    %c0_i32_0 = arith.constant 0 : i32
    %c0_i32_1 = arith.constant 0 : i32
    return %c0_i32, %c0_i32_0 : i32, i32
  }
  func.func @transform_8(%arg0: i32) -> (i32, i32) {
    %c0_i32 = arith.constant 0 : i32
    %c0_i32_0 = arith.constant 0 : i32
    %c0_i32_1 = arith.constant 0 : i32
    return %c0_i32, %c0_i32_0 : i32, i32
  }
  func.func @transform_9(%arg0: i32) -> (i32, i32, i32) {
    %c0_i32 = arith.constant 0 : i32
    %c0_i32_0 = arith.constant 0 : i32
    %c0_i32_1 = arith.constant 0 : i32
    return %arg0, %c0_i32, %c0_i32_0 : i32, i32, i32
  }
}

</mosaic_0001>

<llo_original>
// kernel: tpu_custom_call.1
$region0: #{tpu_custom_call.1}
  #allocation0 [shape = 'u32[]', space=smem, size = 0x4, offset = 0x4, fixed_abs, tag = 'smem constant byte address 0x4 - core index']
  #allocation1 [shape = 'u32[144,128]{1,0:T(1,128)}', space=vmem, size = 0x12000, scoped, tag = 'internal scratch']
  %s0 = inlined_call_operand.vmem [shape: f32[2,4,256], index: 0, kind: input, shape index: {}]
  %s1 = inlined_call_operand.vmem [shape: f32[32,4], index: 1, kind: input, shape index: {}]
  %s2 = inlined_call_operand.vmem [shape: f32[4,4], index: 2, kind: input, shape index: {}]
  %s3 = inlined_call_operand.vmem [shape: f32[2,1], index: 3, kind: input, shape index: {}]
  %s4 = inlined_call_operand.vmem [shape: f32[2,1], index: 4, kind: input, shape index: {}]
  %s5 = inlined_call_operand.vmem [shape: f32[4,2], index: 5, kind: input, shape index: {}]
  %s6 = inlined_call_operand.vmem [shape: f32[2,4], index: 6, kind: input, shape index: {}]
  %s7 = inlined_call_operand.vmem [shape: f32[4,2], index: 7, kind: input, shape index: {}]
  %s8 = inlined_call_operand.vmem [shape: f32[4,2], index: 8, kind: input, shape index: {}]
  %s9 = inlined_call_operand.hbm [shape: f32[2,4,256], index: 9, kind: output, shape index: {}]
  %s10 = sld [smem:[#allocation0]]
  $region69: #{tpu_custom_call.1} parent=0
    _
  %s12 = ssub.s32 1, %s10
  %s13 = scalar_select 0, %s12, %s10
  $region1: #{tpu_custom_call.1} parent=0
    #allocation2 [shape = 'u8[8192]{0}', space=vmem, size = 0x2000, scoped, tag = 'output window, operand 0']
    #allocation3 [shape = 's32[2]{0}', space=sflag, size = 0x8, scoped, tag = 'scoped memory for tpu_custom_call.1']
    %14 = vsyncpa [#allocation3], 0
    %s15 = scalar_lea.sflag [#allocation3], 1
    %16 = vsyncpa %s15, 0
    loop: start=0, step=1, limit=4
    $region2: #{tpu_custom_call.1} parent=1 // loop_pre_header
      _
    $region3: #{tpu_custom_call.1} parent=1 // loop_header
      %s18 = sphi 0, %s22
      %p19 = scmp.ge.s32.totalorder %s18, 4
      %s28 = sphi 0, %s30
      %s31 = sphi 0, %s28
      %s32 = sphi 0, %s31
      %s48 = sphi 0, %s32
      %s52 = sphi 0, %s52
      %s54 = sphi 0, %s52
      %s55 = sphi 0, %s54
      %s69 = sphi 0, %s55
      %s73 = sphi 0, %s73
      %s75 = sphi 0, %s73
      %s76 = sphi 0, %s75
      %s90 = sphi 0, %s76
      %s94 = sphi 0, %s94
      %s96 = sphi 0, %s94
      %s97 = sphi 0, %s96
      %s111 = sphi 0, %s97
      %s115 = sphi 0, %s115
      %s117 = sphi 0, %s115
      %s118 = sphi 0, %s117
      %s132 = sphi 0, %s118
      %s136 = sphi 0, %s136
      %s138 = sphi 0, %s136
      %s139 = sphi 0, %s138
      %s153 = sphi 0, %s139
      %s157 = sphi 0, %s157
      %s159 = sphi 0, %s157
      %s160 = sphi 0, %s159
      %s174 = sphi 0, %s160
      %s178 = sphi 0, %s178
      %s180 = sphi 0, %s178
      %s181 = sphi 0, %s180
      %s195 = sphi 0, %s181
      %s199 = sphi 0, %s199
      %s201 = sphi 0, %s199
      %s202 = sphi 0, %s201
      %s216 = sphi 0, %s202
      %s222 = sphi 0, %s224
      %s225 = sphi 0, %s222
      %s226 = sphi 0, %s225
      %s242 = sphi 0, %s226
    $region4: #{tpu_custom_call.1} parent=1 // loop_header_branch
      %21 = sbr.rel (%p19) target = $region8
    $region5: #{tpu_custom_call.1} parent=1 // loop_body
      %s23 = ssub.s32 %s18, 1
      %s24 = ssub.s32 %s18, 2
      %s25 = sadd.s32 %s18, 1
      %s26 = ssub.s32 %s18, %s25
      %p27 = scmp.eq.s32.totalorder %s26, 0
      %s29 = sadd.s32 %s28, 1
      %s30 = scalar_select %p27, %s28, %s29
      %p33 = pneg %p27
      %p34 = scmp.eq.s32.totalorder %s18, 1
      %p35 = por %p33, %p34
      %p36 = scmp.ne.s32.totalorder %s28, %s31
      %p37 = scmp.eq.s32.totalorder %s18, 0
      %p38 = por %p36, %p37
      %p39 = scmp.ne.s32.totalorder %s28, %s31
      %p40 = scmp.eq.s32.totalorder %s23, 1
      %p41 = por %p39, %p40
      %p42 = scmp.ne.s32.totalorder %s31, %s32
      %p43 = scmp.eq.s32.totalorder %s23, 0
      %p44 = por %p42, %p43
      %p45 = scmp.ne.s32.totalorder %s31, %s32
      %p46 = scmp.eq.s32.totalorder %s24, 1
      %p47 = por %p45, %p46
      %p49 = scmp.ne.s32.totalorder %s32, %s48
      %p50 = scmp.eq.s32.totalorder %s24, 0
      %p51 = por %p49, %p50
      %s53 = sadd.s32 %s52, 1
      %p56 = scmp.eq.s32.totalorder %s18, 1
      %p57 = scmp.ne.s32.totalorder %s52, %s54
      %p58 = scmp.eq.s32.totalorder %s18, 0
      %p59 = por %p57, %p58
      %p60 = scmp.ne.s32.totalorder %s52, %s54
      %p61 = scmp.eq.s32.totalorder %s23, 1
      %p62 = por %p60, %p61
      %p63 = scmp.ne.s32.totalorder %s54, %s55
      %p64 = scmp.eq.s32.totalorder %s23, 0
      %p65 = por %p63, %p64
      %p66 = scmp.ne.s32.totalorder %s54, %s55
      %p67 = scmp.eq.s32.totalorder %s24, 1
      %p68 = por %p66, %p67
      %p70 = scmp.ne.s32.totalorder %s55, %s69
      %p71 = scmp.eq.s32.totalorder %s24, 0
      %p72 = por %p70, %p71
      %s74 = sadd.s32 %s73, 1
      %p77 = scmp.eq.s32.totalorder %s18, 1
      %p78 = scmp.ne.s32.totalorder %s73, %s75
      %p79 = scmp.eq.s32.totalorder %s18, 0
      %p80 = por %p78, %p79
      %p81 = scmp.ne.s32.totalorder %s73, %s75
      %p82 = scmp.eq.s32.totalorder %s23, 1
      %p83 = por %p81, %p82
      %p84 = scmp.ne.s32.totalorder %s75, %s76
      %p85 = scmp.eq.s32.totalorder %s23, 0
      %p86 = por %p84, %p85
      %p87 = scmp.ne.s32.totalorder %s75, %s76
      %p88 = scmp.eq.s32.totalorder %s24, 1
      %p89 = por %p87, %p88
      %p91 = scmp.ne.s32.totalorder %s76, %s90
      %p92 = scmp.eq.s32.totalorder %s24, 0
      %p93 = por %p91, %p92
      %s95 = sadd.s32 %s94, 1
      %p98 = scmp.eq.s32.totalorder %s18, 1
      %p99 = scmp.ne.s32.totalorder %s94, %s96
      %p100 = scmp.eq.s32.totalorder %s18, 0
      %p101 = por %p99, %p100
      %p102 = scmp.ne.s32.totalorder %s94, %s96
      %p103 = scmp.eq.s32.totalorder %s23, 1
      %p104 = por %p102, %p103
      %p105 = scmp.ne.s32.totalorder %s96, %s97
      %p106 = scmp.eq.s32.totalorder %s23, 0
      %p107 = por %p105, %p106
      %p108 = scmp.ne.s32.totalorder %s96, %s97
      %p109 = scmp.eq.s32.totalorder %s24, 1
      %p110 = por %p108, %p109
      %p112 = scmp.ne.s32.totalorder %s97, %s111
      %p113 = scmp.eq.s32.totalorder %s24, 0
      %p114 = por %p112, %p113
      %s116 = sadd.s32 %s115, 1
      %p119 = scmp.eq.s32.totalorder %s18, 1
      %p120 = scmp.ne.s32.totalorder %s115, %s117
      %p121 = scmp.eq.s32.totalorder %s18, 0
      %p122 = por %p120, %p121
      %p123 = scmp.ne.s32.totalorder %s115, %s117
      %p124 = scmp.eq.s32.totalorder %s23, 1
      %p125 = por %p123, %p124
      %p126 = scmp.ne.s32.totalorder %s117, %s118
      %p127 = scmp.eq.s32.totalorder %s23, 0
      %p128 = por %p126, %p127
      %p129 = scmp.ne.s32.totalorder %s117, %s118
      %p130 = scmp.eq.s32.totalorder %s24, 1
      %p131 = por %p129, %p130
      %p133 = scmp.ne.s32.totalorder %s118, %s132
      %p134 = scmp.eq.s32.totalorder %s24, 0
      %p135 = por %p133, %p134
      %s137 = sadd.s32 %s136, 1
      %p140 = scmp.eq.s32.totalorder %s18, 1
      %p141 = scmp.ne.s32.totalorder %s136, %s138
      %p142 = scmp.eq.s32.totalorder %s18, 0
      %p143 = por %p141, %p142
      %p144 = scmp.ne.s32.totalorder %s136, %s138
      %p145 = scmp.eq.s32.totalorder %s23, 1
      %p146 = por %p144, %p145
      %p147 = scmp.ne.s32.totalorder %s138, %s139
      %p148 = scmp.eq.s32.totalorder %s23, 0
      %p149 = por %p147, %p148
      %p150 = scmp.ne.s32.totalorder %s138, %s139
      %p151 = scmp.eq.s32.totalorder %s24, 1
      %p152 = por %p150, %p151
      %p154 = scmp.ne.s32.totalorder %s139, %s153
      %p155 = scmp.eq.s32.totalorder %s24, 0
      %p156 = por %p154, %p155
      %s158 = sadd.s32 %s157, 1
      %p161 = scmp.eq.s32.totalorder %s18, 1
      %p162 = scmp.ne.s32.totalorder %s157, %s159
      %p163 = scmp.eq.s32.totalorder %s18, 0
      %p164 = por %p162, %p163
      %p165 = scmp.ne.s32.totalorder %s157, %s159
      %p166 = scmp.eq.s32.totalorder %s23, 1
      %p167 = por %p165, %p166
      %p168 = scmp.ne.s32.totalorder %s159, %s160
      %p169 = scmp.eq.s32.totalorder %s23, 0
      %p170 = por %p168, %p169
      %p171 = scmp.ne.s32.totalorder %s159, %s160
      %p172 = scmp.eq.s32.totalorder %s24, 1
      %p173 = por %p171, %p172
      %p175 = scmp.ne.s32.totalorder %s160, %s174
      %p176 = scmp.eq.s32.totalorder %s24, 0
      %p177 = por %p175, %p176
      %s179 = sadd.s32 %s178, 1
      %p182 = scmp.eq.s32.totalorder %s18, 1
      %p183 = scmp.ne.s32.totalorder %s178, %s180
      %p184 = scmp.eq.s32.totalorder %s18, 0
      %p185 = por %p183, %p184
      %p186 = scmp.ne.s32.totalorder %s178, %s180
      %p187 = scmp.eq.s32.totalorder %s23, 1
      %p188 = por %p186, %p187
      %p189 = scmp.ne.s32.totalorder %s180, %s181
      %p190 = scmp.eq.s32.totalorder %s23, 0
      %p191 = por %p189, %p190
      %p192 = scmp.ne.s32.totalorder %s180, %s181
      %p193 = scmp.eq.s32.totalorder %s24, 1
      %p194 = por %p192, %p193
      %p196 = scmp.ne.s32.totalorder %s181, %s195
      %p197 = scmp.eq.s32.totalorder %s24, 0
      %p198 = por %p196, %p197
      %s200 = sadd.s32 %s199, 1
      %p203 = scmp.eq.s32.totalorder %s18, 1
      %p204 = scmp.ne.s32.totalorder %s199, %s201
      %p205 = scmp.eq.s32.totalorder %s18, 0
      %p206 = por %p204, %p205
      %p207 = scmp.ne.s32.totalorder %s199, %s201
      %p208 = scmp.eq.s32.totalorder %s23, 1
      %p209 = por %p207, %p208
      %p210 = scmp.ne.s32.totalorder %s201, %s202
      %p211 = scmp.eq.s32.totalorder %s23, 0
      %p212 = por %p210, %p211
      %p213 = scmp.ne.s32.totalorder %s201, %s202
      %p214 = scmp.eq.s32.totalorder %s24, 1
      %p215 = por %p213, %p214
      %p217 = scmp.ne.s32.totalorder %s202, %s216
      %p218 = scmp.eq.s32.totalorder %s24, 0
      %p219 = por %p217, %p218
      %s220 = ssub.s32 %s18, %s25
      %p221 = scmp.eq.s32.totalorder %s220, 0
      %s223 = sadd.s32 %s222, 1
      %s224 = scalar_select %p221, %s222, %s223
      %p227 = pneg %p221
      %p228 = scmp.eq.s32.totalorder %s18, 1
      %p229 = por %p227, %p228
      %p230 = scmp.ne.s32.totalorder %s222, %s225
      %p231 = scmp.eq.s32.totalorder %s18, 0
      %p232 = por %p230, %p231
      %p233 = scmp.ne.s32.totalorder %s222, %s225
      %p234 = scmp.eq.s32.totalorder %s23, 1
      %p235 = por %p233, %p234
      %p236 = scmp.ne.s32.totalorder %s225, %s226
      %p237 = scmp.eq.s32.totalorder %s23, 0
      %p238 = por %p236, %p237
      %p239 = scmp.ne.s32.totalorder %s225, %s226
      %p240 = scmp.eq.s32.totalorder %s24, 1
      %p241 = por %p239, %p240
      %p243 = scmp.ne.s32.totalorder %s226, %s242
      %p244 = scmp.eq.s32.totalorder %s24, 0
      %p245 = por %p243, %p244
      %p246 = scmp.le.s32.totalorder 1, %s18
      %p247 = scmp.lt.s32.totalorder %s18, 3
      %p248 = pnand %p246, %p247
      %p249 = pneg %p248
      // Predicated region
      $region9: #{tpu_custom_call.1} parent=5 // pred_check
        _
      $region10: #{tpu_custom_call.1} parent=5 // pred_check_branch
        %251 = sbr.rel (%p248) target = $region12
      $region11: #{tpu_custom_call.1} parent=5 // pred_region
        %s252 = ssub.s32 %s18, 1
        // Predicated region
        $region13: #{tpu_custom_call.1} parent=11 // pred_check
          %p253 = pneg %p65
        $region14: #{tpu_custom_call.1} parent=11 // pred_check_branch
          %255 = sbr.rel (%p253) target = $region16
        $region15: #{tpu_custom_call.1} parent=11 // pred_region
          _
        $region16: #{tpu_custom_call.1} parent=11 // pred_fallthru
          _
        // Predicated region
        $region17: #{tpu_custom_call.1} parent=11 // pred_check
          %p256 = pneg %p86
        $region18: #{tpu_custom_call.1} parent=11 // pred_check_branch
          %258 = sbr.rel (%p256) target = $region20
        $region19: #{tpu_custom_call.1} parent=11 // pred_region
          _
        $region20: #{tpu_custom_call.1} parent=11 // pred_fallthru
          _
        // Predicated region
        $region21: #{tpu_custom_call.1} parent=11 // pred_check
          %p259 = pneg %p107
        $region22: #{tpu_custom_call.1} parent=11 // pred_check_branch
          %261 = sbr.rel (%p259) target = $region24
        $region23: #{tpu_custom_call.1} parent=11 // pred_region
          _
        $region24: #{tpu_custom_call.1} parent=11 // pred_fallthru
          _
        // Predicated region
        $region25: #{tpu_custom_call.1} parent=11 // pred_check
          %p262 = pneg %p128
        $region26: #{tpu_custom_call.1} parent=11 // pred_check_branch
          %264 = sbr.rel (%p262) target = $region28
        $region27: #{tpu_custom_call.1} parent=11 // pred_region
          _
        $region28: #{tpu_custom_call.1} parent=11 // pred_fallthru
          _
        // Predicated region
        $region29: #{tpu_custom_call.1} parent=11 // pred_check
          %p265 = pneg %p149
        $region30: #{tpu_custom_call.1} parent=11 // pred_check_branch
          %267 = sbr.rel (%p265) target = $region32
        $region31: #{tpu_custom_call.1} parent=11 // pred_region
          _
        $region32: #{tpu_custom_call.1} parent=11 // pred_fallthru
          _
        // Predicated region
        $region33: #{tpu_custom_call.1} parent=11 // pred_check
          %p268 = pneg %p170
        $region34: #{tpu_custom_call.1} parent=11 // pred_check_branch
          %270 = sbr.rel (%p268) target = $region36
        $region35: #{tpu_custom_call.1} parent=11 // pred_region
          _
        $region36: #{tpu_custom_call.1} parent=11 // pred_fallthru
          _
        // Predicated region
        $region37: #{tpu_custom_call.1} parent=11 // pred_check
          %p271 = pneg %p191
        $region38: #{tpu_custom_call.1} parent=11 // pred_check_branch
          %273 = sbr.rel (%p271) target = $region40
        $region39: #{tpu_custom_call.1} parent=11 // pred_region
          _
        $region40: #{tpu_custom_call.1} parent=11 // pred_fallthru
          _
        // Predicated region
        $region41: #{tpu_custom_call.1} parent=11 // pred_check
          %p274 = pneg %p212
        $region42: #{tpu_custom_call.1} parent=11 // pred_check_branch
          %276 = sbr.rel (%p274) target = $region44
        $region43: #{tpu_custom_call.1} parent=11 // pred_region
          _
        $region44: #{tpu_custom_call.1} parent=11 // pred_fallthru
          _
      $region12: #{tpu_custom_call.1} parent=5 // pred_fallthru
        _
      %p277 = scmp.lt.s32.totalorder %s18, 2
      // Predicated region
      $region45: #{tpu_custom_call.1} parent=5 // pred_check
        %p278 = pneg %p277
      $region46: #{tpu_custom_call.1} parent=5 // pred_check_branch
        %280 = sbr.rel (%p278) target = $region48
      $region47: #{tpu_custom_call.1} parent=5 // pred_region
        // Predicated region
        $region49: #{tpu_custom_call.1} parent=47 // pred_check
          %p281 = pneg %p38
        $region50: #{tpu_custom_call.1} parent=47 // pred_check_branch
          %283 = sbr.rel (%p281) target = $region52
        $region51: #{tpu_custom_call.1} parent=47 // pred_region
          %p284 = scmp.lt.s32.totalorder %s18, 1
          %s285 = scalar_select %p284, %s18, 1
          %s286 = smul.addr %s285, 2
          %s287 = smul.addr %s286, 4
          %s288 = scalar_lea.vmem %s0, %s287
        $region52: #{tpu_custom_call.1} parent=47 // pred_fallthru
          _
      $region48: #{tpu_custom_call.1} parent=5 // pred_fallthru
        _
      %p289 = scmp.le.s32.totalorder 1, %s18
      %p290 = scmp.lt.s32.totalorder %s18, 3
      %p291 = pnand %p289, %p290
      %p292 = pneg %p291
      // Predicated region
      $region53: #{tpu_custom_call.1} parent=5 // pred_check
        _
      $region54: #{tpu_custom_call.1} parent=5 // pred_check_branch
        %294 = sbr.rel (%p291) target = $region56
      $region55: #{tpu_custom_call.1} parent=5 // pred_region
        %s295 = ssub.s32 %s18, 1
        %p296 = scmp.lt.s32.totalorder %s23, 1
        %s297 = scalar_select %p296, %s23, 1
        %s298 = smul.addr %s297, 2
        %s299 = smul.addr %s298, 4
        %s300 = scalar_lea.vmem %s0, %s299
        %p301 = pneg %p44
        %p302 = pneg %p41
        %p303 = pneg %p65
        %p304 = pneg %p62
        %p305 = pneg %p86
        %p306 = pneg %p83
        %p307 = pneg %p107
        %p308 = pneg %p104
        %p309 = pneg %p128
        %p310 = pneg %p125
        %p311 = pneg %p149
        %p312 = pneg %p146
        %p313 = pneg %p170
        %p314 = pneg %p167
        %p315 = pneg %p191
        %p316 = pneg %p188
        %p317 = pneg %p212
        %p318 = pneg %p209
        %p319 = pneg %p238
        %p320 = pneg %p235
        %s321 = sand.u32 %s225, 1
        %s322 = scalar_lea.sflag [#allocation3], %s321
        %s323 = sand.u32 %s225, 1
        %s324 = smul.addr %s323, 8
        %s325 = scalar_lea.vmem [#allocation2], %s324
        %p326 = scmp.lt.s32.totalorder %s23, 1
        %s327 = scalar_select %p326, %s23, 1
        %s328 = smul.addr %s327, 2
        %s329 = smul.addr %s328, 4
        %s330 = scalar_lea.vmem %s0, %s329
        %v331 = vld [vmem:[%s330] sm:$0xff]
        %v332 = vld [vmem:[%s1] sm:$0xff]
        %v333 = vld [vmem:[%s1 + $0x8] sm:$0xff]
        %v334 = vld [vmem:[%s1 + $0x10] sm:$0xff]
        %v335 = vld [vmem:[%s1 + $0x18] sm:$0xff]
        %v337 = vcombine.high %v331, %v331
        %vm338 = vcmask 31744
        %v340 = vsel %vm338, %v332, 0
        %v343 = vsel %vm338, %v333, 0
        %v346 = vsel %vm338, %v334, 0
        %v349 = vsel %vm338, %v335, 0
        %vm351 = vcmask 1043456
        %v352 = vsel %vm351, %v331, 0
        %v354 = vsel %vm351, %v337, 0
        %356 = vmatprep.subr.mxu0 %v354
        %357 = vmatpush1.msra.mxu0 %v352
        %358 = vmatprep.subr.mxu0 0.0
        %359 = vmatpush1.msra.mxu0 0.0
        %360 = vmatprep.subr.mxu0 0.0
        %361 = vmatpush1.msra.mxu0 0.0
        %362 = vmatprep.subr.mxu0 0.0
        %363 = vmatpush1.msra.mxu0 0.0
        %364 = vmatprep.subr.mxu0 0.0
        %365 = vmatpush1.msra.mxu0 0.0
        %366 = vmatprep.subr.mxu0 0.0
        %367 = vmatpush1.msra.mxu0 0.0
        %368 = vmatprep.subr.mxu0 0.0
        %369 = vmatpush1.msra.mxu0 0.0
        %370 = vmatprep.subr.mxu0 0.0
        %371 = vmatpush1.msra.mxu0 0.0
        %372 = vmatprep.subr.mxu0 0.0
        %373 = vmatpush1.msra.mxu0 0.0
        %374 = vmatprep.subr.mxu0 0.0
        %375 = vmatpush1.msra.mxu0 0.0
        %376 = vmatprep.subr.mxu0 0.0
        %377 = vmatpush1.msra.mxu0 0.0
        %378 = vmatprep.subr.mxu0 0.0
        %379 = vmatpush1.msra.mxu0 0.0
        %380 = vmatprep.subr.mxu0 0.0
        %381 = vmatpush1.msra.mxu0 0.0
        %382 = vmatprep.subr.mxu0 0.0
        %383 = vmatpush1.msra.mxu0 0.0
        %384 = vmatprep.subr.mxu0 0.0
        %385 = vmatpush1.msra.mxu0 0.0
        %386 = vmatprep.subr.mxu0 0.0
        %387 = vmatpush1.msra.mxu0 0.0
        %388 = vmatprep.subr.mxu0 0.0
        %389 = vmatpush1.msra.mxu0 0.0
        %390 = vmatprep.subr.mxu0 0.0
        %391 = vmatpush1.msra.mxu0 0.0
        %392 = vmatprep.subr.mxu0 0.0
        %393 = vmatpush1.msra.mxu0 0.0
        %394 = vmatprep.subr.mxu0 0.0
        %395 = vmatpush1.msra.mxu0 0.0
        %396 = vmatprep.subr.mxu0 0.0
        %397 = vmatpush1.msra.mxu0 0.0
        %398 = vmatprep.subr.mxu0 0.0
        %399 = vmatpush1.msra.mxu0 0.0
        %400 = vmatprep.subr.mxu0 0.0
        %401 = vmatpush1.msra.mxu0 0.0
        %402 = vmatprep.subr.mxu0 0.0
        %403 = vmatpush1.msra.mxu0 0.0
        %404 = vmatprep.subr.mxu0 0.0
        %405 = vmatpush1.msra.mxu0 0.0
        %406 = vmatprep.subr.mxu0 0.0
        %407 = vmatpush1.msra.mxu0 0.0
        %408 = vmatprep.subr.mxu0 0.0
        %409 = vmatpush1.msra.mxu0 0.0
        %410 = vmatprep.subr.mxu0 0.0
        %411 = vmatpush1.msra.mxu0 0.0
        %412 = vmatprep.subr.mxu0 0.0
        %413 = vmatpush1.msra.mxu0 0.0
        %414 = vmatprep.subr.mxu0 0.0
        %415 = vmatpush1.msra.mxu0 0.0
        %416 = vmatprep.subr.mxu0 0.0
        %417 = vmatpush1.msra.mxu0 0.0
        %418 = vmatprep.subr.mxu0 0.0
        %419 = vmatpush1.msra.mxu0 0.0
        %420 = vmatprep.mubr.f32.mxu0 0.0
        %421 = vmatmul.mubr.f32.gmra.mrb[0].mxu0 %v340
        %v422 = vpop.f32.mrb[0].mxu0
        %v423 = vadd.f32 0.0, %v422
        %v424 = vpop.f32.mrb[0].mxu0
        %v425 = vadd.f32 0.0, %v424
        %426 = vmatprep.mubr.f32.mxu0 0.0
        %427 = vmatmul.mubr.f32.gmra.mrb[0].mxu0 %v343
        %v428 = vpop.f32.mrb[0].mxu0
        %v429 = vadd.f32 0.0, %v428
        %v430 = vpop.f32.mrb[0].mxu0
        %v431 = vadd.f32 0.0, %v430
        %432 = vmatprep.mubr.f32.mxu0 0.0
        %433 = vmatmul.mubr.f32.gmra.mrb[0].mxu0 %v346
        %v434 = vpop.f32.mrb[0].mxu0
        %v435 = vadd.f32 0.0, %v434
        %v436 = vpop.f32.mrb[0].mxu0
        %v437 = vadd.f32 0.0, %v436
        %438 = vmatprep.mubr.f32.mxu0 0.0
        %439 = vmatmul.mubr.f32.gmra.mrb[0].mxu0 %v349
        %v440 = vpop.f32.mrb[0].mxu0
        %v441 = vadd.f32 0.0, %v440
        %v442 = vpop.f32.mrb[0].mxu0
        %v443 = vadd.f32 0.0, %v442
        %444 = vdwg.mxu0
        %vm445 = vcmask 1040384
        %v446 = vsel %vm445, %v423, -inf
        %v447 = vsel %vm445, %v425, -inf
        %v448 = vmax.f32 %v446, %v447
        %449 = vmax.xlane.f32.xlu0 %v448
        %v450 = vpop.xlane.xlu0 %449
        %v451 = vsub.f32 %v423, %v450
        %v452 = vsub.f32 %v425, %v450
        %v453 = vmul.f32 %v451, 1.442695
        %v454 = vpow.pop %v453
        %v455 = vmul.f32 %v452, 1.442695
        %v456 = vpow.pop %v455
        %v457 = vlaneseq
        %v458 = vshrl.u32 %v457, 7
        %v459 = vsub.s32 0, %v458
        %v460 = vrot.slane %v454, %v459
        %v461 = vlaneseq
        %v462 = vshrl.u32 %v461, 7
        %v463 = vsub.s32 0, %v462
        %v464 = vrot.slane %v456, %v463
        %v465 = vmul.f32 %v429, %v460
        %v466 = vmul.f32 %v431, %v464
        %vm467 = vcmask 1041408
        %v468 = vsel %vm467, %v465, 0.0
        %v469 = vsel %vm467, %v466, 0.0
        %v470 = vadd.f32 %v468, %v469
        %471 = vadd.xlane.f32.xlu0 %v470
        %v472 = vpop.xlane.xlu0 %471
        %v473 = vsel %vm445, %v454, 0.0
        %v474 = vsel %vm445, %v456, 0.0
        %v475 = vadd.f32 %v473, %v474
        %476 = vadd.xlane.f32.xlu0 %v475
        %v477 = vpop.xlane.xlu0 %476
        %v478 = vrcp.pop %v477
        %v479 = vlaneseq
        %v480 = vshrl.u32 %v479, 7
        %v481 = vsub.s32 0, %v480
        %v482 = vrot.slane %v478, %v481
        %v483 = vmul.f32 %v472, %v482
        %v484 = vsel %vm467, %v483, 0.0
        %v485 = vrot.slane %v484, 4
        %v486 = vadd.f32 %v484, %v485
        %v487 = vrot.slane %v486, 2
        %v488 = vadd.f32 %v486, %v487
        %v489 = vrot.slane %v488, 1
        %v490 = vadd.f32 %v488, %v489
        %v491 = vrcp.pop 2.0
        %v492 = vmul.f32 %v490, %v491
        %v493 = vsub.f32 %v483, %v492
        %v494 = vmul.f32 %v493, %v493
        %v495 = vsel %vm467, %v494, 0.0
        %v496 = vrot.slane %v495, 4
        %v497 = vadd.f32 %v495, %v496
        %v498 = vrot.slane %v497, 2
        %v499 = vadd.f32 %v497, %v498
        %v500 = vrot.slane %v499, 1
        %v501 = vadd.f32 %v499, %v500
        %v502 = vmul.f32 %v501, %v491
        %v503 = vadd.f32 %v502, 1e-05
        %v504 = vrsqrt.pop %v503
        %v505 = vmul.f32 %v493, %v504
        %v506 = vld [vmem:[%s3] sm:$0x3]
        %v507 = vmul.f32 %v505, %v506
        %v508 = vld [vmem:[%s4] sm:$0x3]
        %v509 = vadd.f32 %v507, %v508
        %v510 = vmax.f32 %v509, 0.0
        %v511 = vld [vmem:[%s5] sm:$0xf]
        %vm512 = vcmask 15360
        %v514 = vsel %vm512, %v511, 0
        %v517 = vsel %vm467, %v510, 0
        %519 = vmatprep.subr.mxu0 0.0
        %520 = vmatpush1.msra.mxu0 %v517
        %521 = vmatprep.subr.mxu0 0.0
        %522 = vmatpush1.msra.mxu0 0.0
        %523 = vmatprep.subr.mxu0 0.0
        %524 = vmatpush1.msra.mxu0 0.0
        %525 = vmatprep.subr.mxu0 0.0
        %526 = vmatpush1.msra.mxu0 0.0
        %527 = vmatprep.subr.mxu0 0.0
        %528 = vmatpush1.msra.mxu0 0.0
        %529 = vmatprep.subr.mxu0 0.0
        %530 = vmatpush1.msra.mxu0 0.0
        %531 = vmatprep.subr.mxu0 0.0
        %532 = vmatpush1.msra.mxu0 0.0
        %533 = vmatprep.subr.mxu0 0.0
        %534 = vmatpush1.msra.mxu0 0.0
        %535 = vmatprep.subr.mxu0 0.0
        %536 = vmatpush1.msra.mxu0 0.0
        %537 = vmatprep.subr.mxu0 0.0
        %538 = vmatpush1.msra.mxu0 0.0
        %539 = vmatprep.subr.mxu0 0.0
        %540 = vmatpush1.msra.mxu0 0.0
        %541 = vmatprep.subr.mxu0 0.0
        %542 = vmatpush1.msra.mxu0 0.0
        %543 = vmatprep.subr.mxu0 0.0
        %544 = vmatpush1.msra.mxu0 0.0
        %545 = vmatprep.subr.mxu0 0.0
        %546 = vmatpush1.msra.mxu0 0.0
        %547 = vmatprep.subr.mxu0 0.0
        %548 = vmatpush1.msra.mxu0 0.0
        %549 = vmatprep.subr.mxu0 0.0
        %550 = vmatpush1.msra.mxu0 0.0
        %551 = vmatprep.subr.mxu0 0.0
        %552 = vmatpush1.msra.mxu0 0.0
        %553 = vmatprep.subr.mxu0 0.0
        %554 = vmatpush1.msra.mxu0 0.0
        %555 = vmatprep.subr.mxu0 0.0
        %556 = vmatpush1.msra.mxu0 0.0
        %557 = vmatprep.subr.mxu0 0.0
        %558 = vmatpush1.msra.mxu0 0.0
        %559 = vmatprep.subr.mxu0 0.0
        %560 = vmatpush1.msra.mxu0 0.0
        %561 = vmatprep.subr.mxu0 0.0
        %562 = vmatpush1.msra.mxu0 0.0
        %563 = vmatprep.subr.mxu0 0.0
        %564 = vmatpush1.msra.mxu0 0.0
        %565 = vmatprep.subr.mxu0 0.0
        %566 = vmatpush1.msra.mxu0 0.0
        %567 = vmatprep.subr.mxu0 0.0
        %568 = vmatpush1.msra.mxu0 0.0
        %569 = vmatprep.subr.mxu0 0.0
        %570 = vmatpush1.msra.mxu0 0.0
        %571 = vmatprep.subr.mxu0 0.0
        %572 = vmatpush1.msra.mxu0 0.0
        %573 = vmatprep.subr.mxu0 0.0
        %574 = vmatpush1.msra.mxu0 0.0
        %575 = vmatprep.subr.mxu0 0.0
        %576 = vmatpush1.msra.mxu0 0.0
        %577 = vmatprep.subr.mxu0 0.0
        %578 = vmatpush1.msra.mxu0 0.0
        %579 = vmatprep.subr.mxu0 0.0
        %580 = vmatpush1.msra.mxu0 0.0
        %581 = vmatprep.subr.mxu0 0.0
        %582 = vmatpush1.msra.mxu0 0.0
        %583 = vmatprep.mubr.f32.mxu0 0.0
        %584 = vmatmul.mubr.f32.gmra.mrb[0].mxu0 %v514
        %v585 = vpop.f32.mrb[0].mxu0
        %v586 = vadd.f32 0.0, %v585
        %v587 = vpop.f32.mrb[0].mxu0
        %588 = vdwg.mxu0
        %v589 = vxor.u32 %v586, 2147483648
        %v590 = vmul.f32 %v589, 1.442695
        %v591 = vpow.pop %v590
        %v592 = vadd.f32 %v591, 1.0
        %v593 = vrcp.pop %v592
        %v594 = vmul.f32 1.0, %v593
        %v595 = vsel %vm467, %v435, -inf
        %v596 = vsel %vm467, %v437, -inf
        %v597 = vmax.f32 %v595, %v596
        %598 = vmax.xlane.f32.xlu0 %v597
        %v599 = vpop.xlane.xlu0 %598
        %v600 = vsel %vm467, %v599, -inf
        %v601 = vrot.slane %v600, 4
        %v602 = vmax.f32 %v600, %v601
        %v603 = vrot.slane %v602, 2
        %v604 = vmax.f32 %v602, %v603
        %v605 = vrot.slane %v604, 1
        %v606 = vmax.f32 %v604, %v605
        %v607 = vsub.f32 %v599, %v606
        %v608 = vmul.f32 %v607, 1.442695
        %v609 = vpow.pop %v608
        %v610 = vsel %vm467, %v609, 0.0
        %v611 = vrot.slane %v610, 4
        %v612 = vadd.f32 %v610, %v611
        %v613 = vrot.slane %v612, 2
        %v614 = vadd.f32 %v612, %v613
        %v615 = vrot.slane %v614, 1
        %v616 = vadd.f32 %v614, %v615
        %v617 = vrcp.pop %v616
        %v618 = vmul.f32 %v609, %v617
        %v619 = vmul.f32 %v441, %v618
        %v620 = vmul.f32 %v443, %v618
        %v621 = vsel %vm467, %v619, 0.0
        %v622 = vrot.slane %v621, 4
        %v623 = vadd.f32 %v621, %v622
        %v624 = vrot.slane %v623, 2
        %v625 = vadd.f32 %v623, %v624
        %v626 = vrot.slane %v625, 1
        %v627 = vadd.f32 %v625, %v626
        %v628 = vsel %vm467, %v620, 0.0
        %v629 = vrot.slane %v628, 4
        %v630 = vadd.f32 %v628, %v629
        %v631 = vrot.slane %v630, 2
        %v632 = vadd.f32 %v630, %v631
        %v633 = vrot.slane %v632, 1
        %v634 = vadd.f32 %v632, %v633
        %v635 = vxor.u32 %v627, 2147483648
        %v636 = vxor.u32 %v634, 2147483648
        %v637 = vmul.f32 %v635, 1.442695
        %v638 = vpow.pop %v637
        %v639 = vmul.f32 %v636, 1.442695
        %v640 = vpow.pop %v639
        %v641 = vadd.f32 %v638, 1.0
        %v642 = vadd.f32 %v640, 1.0
        %v643 = vrcp.pop %v641
        %v644 = vmul.f32 1.0, %v643
        %v645 = vrcp.pop %v642
        %v646 = vmul.f32 1.0, %v645
        %v647 = vadd.f32 %v644, %v646
        %648 = vadd.xlane.f32.xlu0 %v647
        %v649 = vpop.xlane.xlu0 %648
        %v650 = vrcp.pop 256.0
        %v651 = vmul.f32 %v649, %v650
        %v652 = vmul.f32 %v594, %v651
        %v653 = vadd.f32 %v652, %v594
        %v654 = vadd.f32 %v653, %v651
        %v655 = vld [vmem:[%s6] sm:$0x3]
        %v657 = vsel %vm338, %v655, 0
        %v660 = vsel %vm351, %v654, 0
        %662 = vmatprep.subr.mxu0 0.0
        %663 = vmatpush1.msra.mxu0 %v660
        %664 = vmatprep.subr.mxu0 0.0
        %665 = vmatpush1.msra.mxu0 0.0
        %666 = vmatprep.subr.mxu0 0.0
        %667 = vmatpush1.msra.mxu0 0.0
        %668 = vmatprep.subr.mxu0 0.0
        %669 = vmatpush1.msra.mxu0 0.0
        %670 = vmatprep.subr.mxu0 0.0
        %671 = vmatpush1.msra.mxu0 0.0
        %672 = vmatprep.subr.mxu0 0.0
        %673 = vmatpush1.msra.mxu0 0.0
        %674 = vmatprep.subr.mxu0 0.0
        %675 = vmatpush1.msra.mxu0 0.0
        %676 = vmatprep.subr.mxu0 0.0
        %677 = vmatpush1.msra.mxu0 0.0
        %678 = vmatprep.subr.mxu0 0.0
        %679 = vmatpush1.msra.mxu0 0.0
        %680 = vmatprep.subr.mxu0 0.0
        %681 = vmatpush1.msra.mxu0 0.0
        %682 = vmatprep.subr.mxu0 0.0
        %683 = vmatpush1.msra.mxu0 0.0
        %684 = vmatprep.subr.mxu0 0.0
        %685 = vmatpush1.msra.mxu0 0.0
        %686 = vmatprep.subr.mxu0 0.0
        %687 = vmatpush1.msra.mxu0 0.0
        %688 = vmatprep.subr.mxu0 0.0
        %689 = vmatpush1.msra.mxu0 0.0
        %690 = vmatprep.subr.mxu0 0.0
        %691 = vmatpush1.msra.mxu0 0.0
        %692 = vmatprep.subr.mxu0 0.0
        %693 = vmatpush1.msra.mxu0 0.0
        %694 = vmatprep.subr.mxu0 0.0
        %695 = vmatpush1.msra.mxu0 0.0
        %696 = vmatprep.subr.mxu0 0.0
        %697 = vmatpush1.msra.mxu0 0.0
        %698 = vmatprep.subr.mxu0 0.0
        %699 = vmatpush1.msra.mxu0 0.0
        %700 = vmatprep.subr.mxu0 0.0
        %701 = vmatpush1.msra.mxu0 0.0
        %702 = vmatprep.subr.mxu0 0.0
        %703 = vmatpush1.msra.mxu0 0.0
        %704 = vmatprep.subr.mxu0 0.0
        %705 = vmatpush1.msra.mxu0 0.0
        %706 = vmatprep.subr.mxu0 0.0
        %707 = vmatpush1.msra.mxu0 0.0
        %708 = vmatprep.subr.mxu0 0.0
        %709 = vmatpush1.msra.mxu0 0.0
        %710 = vmatprep.subr.mxu0 0.0
        %711 = vmatpush1.msra.mxu0 0.0
        %712 = vmatprep.subr.mxu0 0.0
        %713 = vmatpush1.msra.mxu0 0.0
        %714 = vmatprep.subr.mxu0 0.0
        %715 = vmatpush1.msra.mxu0 0.0
        %716 = vmatprep.subr.mxu0 0.0
        %717 = vmatpush1.msra.mxu0 0.0
        %718 = vmatprep.subr.mxu0 0.0
        %719 = vmatpush1.msra.mxu0 0.0
        %720 = vmatprep.subr.mxu0 0.0
        %721 = vmatpush1.msra.mxu0 0.0
        %722 = vmatprep.subr.mxu0 0.0
        %723 = vmatpush1.msra.mxu0 0.0
        %724 = vmatprep.subr.mxu0 0.0
        %725 = vmatpush1.msra.mxu0 0.0
        %726 = vmatprep.mubr.f32.mxu0 0.0
        %727 = vmatmul.mubr.f32.gmra.mrb[0].mxu0 %v657
        %v728 = vpop.f32.mrb[0].mxu0
        %v729 = vadd.f32 0.0, %v728
        %v730 = vpop.f32.mrb[0].mxu0
        %731 = vdwg.mxu0
        %v732 = vmax.f32 %v729, 0.0
        %v733 = vld [vmem:[%s7] sm:$0xf]
        %v735 = vsel %vm512, %v733, 0
        %v738 = vsel %vm467, %v732, 0
        %740 = vmatprep.subr.mxu0 0.0
        %741 = vmatpush1.msra.mxu0 %v738
        %742 = vmatprep.subr.mxu0 0.0
        %743 = vmatpush1.msra.mxu0 0.0
        %744 = vmatprep.subr.mxu0 0.0
        %745 = vmatpush1.msra.mxu0 0.0
        %746 = vmatprep.subr.mxu0 0.0
        %747 = vmatpush1.msra.mxu0 0.0
        %748 = vmatprep.subr.mxu0 0.0
        %749 = vmatpush1.msra.mxu0 0.0
        %750 = vmatprep.subr.mxu0 0.0
        %751 = vmatpush1.msra.mxu0 0.0
        %752 = vmatprep.subr.mxu0 0.0
        %753 = vmatpush1.msra.mxu0 0.0
        %754 = vmatprep.subr.mxu0 0.0
        %755 = vmatpush1.msra.mxu0 0.0
        %756 = vmatprep.subr.mxu0 0.0
        %757 = vmatpush1.msra.mxu0 0.0
        %758 = vmatprep.subr.mxu0 0.0
        %759 = vmatpush1.msra.mxu0 0.0
        %760 = vmatprep.subr.mxu0 0.0
        %761 = vmatpush1.msra.mxu0 0.0
        %762 = vmatprep.subr.mxu0 0.0
        %763 = vmatpush1.msra.mxu0 0.0
        %764 = vmatprep.subr.mxu0 0.0
        %765 = vmatpush1.msra.mxu0 0.0
        %766 = vmatprep.subr.mxu0 0.0
        %767 = vmatpush1.msra.mxu0 0.0
        %768 = vmatprep.subr.mxu0 0.0
        %769 = vmatpush1.msra.mxu0 0.0
        %770 = vmatprep.subr.mxu0 0.0
        %771 = vmatpush1.msra.mxu0 0.0
        %772 = vmatprep.subr.mxu0 0.0
        %773 = vmatpush1.msra.mxu0 0.0
        %774 = vmatprep.subr.mxu0 0.0
        %775 = vmatpush1.msra.mxu0 0.0
        %776 = vmatprep.subr.mxu0 0.0
        %777 = vmatpush1.msra.mxu0 0.0
        %778 = vmatprep.subr.mxu0 0.0
        %779 = vmatpush1.msra.mxu0 0.0
        %780 = vmatprep.subr.mxu0 0.0
        %781 = vmatpush1.msra.mxu0 0.0
        %782 = vmatprep.subr.mxu0 0.0
        %783 = vmatpush1.msra.mxu0 0.0
        %784 = vmatprep.subr.mxu0 0.0
        %785 = vmatpush1.msra.mxu0 0.0
        %786 = vmatprep.subr.mxu0 0.0
        %787 = vmatpush1.msra.mxu0 0.0
        %788 = vmatprep.subr.mxu0 0.0
        %789 = vmatpush1.msra.mxu0 0.0
        %790 = vmatprep.subr.mxu0 0.0
        %791 = vmatpush1.msra.mxu0 0.0
        %792 = vmatprep.subr.mxu0 0.0
        %793 = vmatpush1.msra.mxu0 0.0
        %794 = vmatprep.subr.mxu0 0.0
        %795 = vmatpush1.msra.mxu0 0.0
        %796 = vmatprep.subr.mxu0 0.0
        %797 = vmatpush1.msra.mxu0 0.0
        %798 = vmatprep.subr.mxu0 0.0
        %799 = vmatpush1.msra.mxu0 0.0
        %800 = vmatprep.subr.mxu0 0.0
        %801 = vmatpush1.msra.mxu0 0.0
        %802 = vmatprep.subr.mxu0 0.0
        %803 = vmatpush1.msra.mxu0 0.0
        %804 = vmatprep.mubr.f32.mxu0 0.0
        %805 = vmatmul.mubr.f32.gmra.mrb[0].mxu0 %v735
        %v806 = vpop.f32.mrb[0].mxu0
        %v807 = vadd.f32 0.0, %v806
        %v808 = vpop.f32.mrb[0].mxu0
        %809 = vdwg.mxu0
        %v810 = vld [vmem:[%s8] sm:$0xf]
        %v812 = vsel %vm512, %v810, 0
        %814 = vmatprep.subr.mxu0 0.0
        %815 = vmatpush1.msra.mxu0 %v738
        %816 = vmatprep.subr.mxu0 0.0
        %817 = vmatpush1.msra.mxu0 0.0
        %818 = vmatprep.subr.mxu0 0.0
        %819 = vmatpush1.msra.mxu0 0.0
        %820 = vmatprep.subr.mxu0 0.0
        %821 = vmatpush1.msra.mxu0 0.0
        %822 = vmatprep.subr.mxu0 0.0
        %823 = vmatpush1.msra.mxu0 0.0
        %824 = vmatprep.subr.mxu0 0.0
        %825 = vmatpush1.msra.mxu0 0.0
        %826 = vmatprep.subr.mxu0 0.0
        %827 = vmatpush1.msra.mxu0 0.0
        %828 = vmatprep.subr.mxu0 0.0
        %829 = vmatpush1.msra.mxu0 0.0
        %830 = vmatprep.subr.mxu0 0.0
        %831 = vmatpush1.msra.mxu0 0.0
        %832 = vmatprep.subr.mxu0 0.0
        %833 = vmatpush1.msra.mxu0 0.0
        %834 = vmatprep.subr.mxu0 0.0
        %835 = vmatpush1.msra.mxu0 0.0
        %836 = vmatprep.subr.mxu0 0.0
        %837 = vmatpush1.msra.mxu0 0.0
        %838 = vmatprep.subr.mxu0 0.0
        %839 = vmatpush1.msra.mxu0 0.0
        %840 = vmatprep.subr.mxu0 0.0
        %841 = vmatpush1.msra.mxu0 0.0
        %842 = vmatprep.subr.mxu0 0.0
        %843 = vmatpush1.msra.mxu0 0.0
        %844 = vmatprep.subr.mxu0 0.0
        %845 = vmatpush1.msra.mxu0 0.0
        %846 = vmatprep.subr.mxu0 0.0
        %847 = vmatpush1.msra.mxu0 0.0
        %848 = vmatprep.subr.mxu0 0.0
        %849 = vmatpush1.msra.mxu0 0.0
        %850 = vmatprep.subr.mxu0 0.0
        %851 = vmatpush1.msra.mxu0 0.0
        %852 = vmatprep.subr.mxu0 0.0
        %853 = vmatpush1.msra.mxu0 0.0
        %854 = vmatprep.subr.mxu0 0.0
        %855 = vmatpush1.msra.mxu0 0.0
        %856 = vmatprep.subr.mxu0 0.0
        %857 = vmatpush1.msra.mxu0 0.0
        %858 = vmatprep.subr.mxu0 0.0
        %859 = vmatpush1.msra.mxu0 0.0
        %860 = vmatprep.subr.mxu0 0.0
        %861 = vmatpush1.msra.mxu0 0.0
        %862 = vmatprep.subr.mxu0 0.0
        %863 = vmatpush1.msra.mxu0 0.0
        %864 = vmatprep.subr.mxu0 0.0
        %865 = vmatpush1.msra.mxu0 0.0
        %866 = vmatprep.subr.mxu0 0.0
        %867 = vmatpush1.msra.mxu0 0.0
        %868 = vmatprep.subr.mxu0 0.0
        %869 = vmatpush1.msra.mxu0 0.0
        %870 = vmatprep.subr.mxu0 0.0
        %871 = vmatpush1.msra.mxu0 0.0
        %872 = vmatprep.subr.mxu0 0.0
        %873 = vmatpush1.msra.mxu0 0.0
        %874 = vmatprep.subr.mxu0 0.0
        %875 = vmatpush1.msra.mxu0 0.0
        %876 = vmatprep.subr.mxu0 0.0
        %877 = vmatpush1.msra.mxu0 0.0
        %878 = vmatprep.mubr.f32.mxu0 0.0
        %879 = vmatmul.mubr.f32.gmra.mrb[0].mxu0 %v812
        %v880 = vpop.f32.mrb[0].mxu0
        %v881 = vadd.f32 0.0, %v880
        %v882 = vpop.f32.mrb[0].mxu0
        %883 = vdwg.mxu0
        %v884 = vmax.f32 %v807, %v881
        %v885 = vsub.f32 %v807, %v884
        %v886 = vmul.f32 %v885, 1.442695
        %v887 = vpow.pop %v886
        %v888 = vsub.f32 %v881, %v884
        %v889 = vmul.f32 %v888, 1.442695
        %v890 = vpow.pop %v889
        %v891 = vadd.f32 %v887, %v890
        %v892 = vrcp.pop %v891
        %v893 = vmul.f32 %v887, %v892
        %v894 = vmul.f32 %v890, %v892
        %v895 = vmul.f32 %v594, %v893
        %v896 = vadd.f32 %v895, %v894
        %898 = vset.pattern.permute.xlu0 0
        %899 = vperm.xlu0 %898, %v896
        %v900 = vpop.permute.xlu0 %899
        %v902 = vmul.f32 %v644, %v900
        %v903 = vmul.f32 %v646, %v900
        %v904 = vmul.f32 %v902, 1.442695
        %v905 = vpow.pop %v904
        %v906 = vmul.f32 %v903, 1.442695
        %v907 = vpow.pop %v906
        %v908 = vld [vmem:[%s2] sm:$0xf]
        %v910 = vsel %vm338, %v908, 0
        %912 = vmatprep.subr.mxu0 %v354
        %913 = vmatpush1.msra.mxu0 %v352
        %914 = vmatprep.subr.mxu0 0.0
        %915 = vmatpush1.msra.mxu0 0.0
        %916 = vmatprep.subr.mxu0 0.0
        %917 = vmatpush1.msra.mxu0 0.0
        %918 = vmatprep.subr.mxu0 0.0
        %919 = vmatpush1.msra.mxu0 0.0
        %920 = vmatprep.subr.mxu0 0.0
        %921 = vmatpush1.msra.mxu0 0.0
        %922 = vmatprep.subr.mxu0 0.0
        %923 = vmatpush1.msra.mxu0 0.0
        %924 = vmatprep.subr.mxu0 0.0
        %925 = vmatpush1.msra.mxu0 0.0
        %926 = vmatprep.subr.mxu0 0.0
        %927 = vmatpush1.msra.mxu0 0.0
        %928 = vmatprep.subr.mxu0 0.0
        %929 = vmatpush1.msra.mxu0 0.0
        %930 = vmatprep.subr.mxu0 0.0
        %931 = vmatpush1.msra.mxu0 0.0
        %932 = vmatprep.subr.mxu0 0.0
        %933 = vmatpush1.msra.mxu0 0.0
        %934 = vmatprep.subr.mxu0 0.0
        %935 = vmatpush1.msra.mxu0 0.0
        %936 = vmatprep.subr.mxu0 0.0
        %937 = vmatpush1.msra.mxu0 0.0
        %938 = vmatprep.subr.mxu0 0.0
        %939 = vmatpush1.msra.mxu0 0.0
        %940 = vmatprep.subr.mxu0 0.0
        %941 = vmatpush1.msra.mxu0 0.0
        %942 = vmatprep.subr.mxu0 0.0
        %943 = vmatpush1.msra.mxu0 0.0
        %944 = vmatprep.subr.mxu0 0.0
        %945 = vmatpush1.msra.mxu0 0.0
        %946 = vmatprep.subr.mxu0 0.0
        %947 = vmatpush1.msra.mxu0 0.0
        %948 = vmatprep.subr.mxu0 0.0
        %949 = vmatpush1.msra.mxu0 0.0
        %950 = vmatprep.subr.mxu0 0.0
        %951 = vmatpush1.msra.mxu0 0.0
        %952 = vmatprep.subr.mxu0 0.0
        %953 = vmatpush1.msra.mxu0 0.0
        %954 = vmatprep.subr.mxu0 0.0
        %955 = vmatpush1.msra.mxu0 0.0
        %956 = vmatprep.subr.mxu0 0.0
        %957 = vmatpush1.msra.mxu0 0.0
        %958 = vmatprep.subr.mxu0 0.0
        %959 = vmatpush1.msra.mxu0 0.0
        %960 = vmatprep.subr.mxu0 0.0
        %961 = vmatpush1.msra.mxu0 0.0
        %962 = vmatprep.subr.mxu0 0.0
        %963 = vmatpush1.msra.mxu0 0.0
        %964 = vmatprep.subr.mxu0 0.0
        %965 = vmatpush1.msra.mxu0 0.0
        %966 = vmatprep.subr.mxu0 0.0
        %967 = vmatpush1.msra.mxu0 0.0
        %968 = vmatprep.subr.mxu0 0.0
        %969 = vmatpush1.msra.mxu0 0.0
        %970 = vmatprep.subr.mxu0 0.0
        %971 = vmatpush1.msra.mxu0 0.0
        %972 = vmatprep.subr.mxu0 0.0
        %973 = vmatpush1.msra.mxu0 0.0
        %974 = vmatprep.subr.mxu0 0.0
        %975 = vmatpush1.msra.mxu0 0.0
        %976 = vmatprep.mubr.f32.mxu0 0.0
        %977 = vmatmul.mubr.f32.gmra.mrb[0].mxu0 %v910
        %v978 = vpop.f32.mrb[0].mxu0
        %v979 = vadd.f32 0.0, %v978
        %v980 = vpop.f32.mrb[0].mxu0
        %v981 = vadd.f32 0.0, %v980
        %982 = vdwg.mxu0
        %v983 = vmax.f32 %v979, 0.0
        %v984 = vmax.f32 %v981, 0.0
        %v985 = vmul.f32 %v983, %v905
        %v986 = vmul.f32 %v984, %v907
        %v987 = vsel %vm351, %v985, 0.0
        %v988 = vsel %vm351, %v986, 0.0
        %v989 = vadd.f32 %v987, %v988
        %990 = vadd.xlane.f32.xlu0 %v989
        %v991 = vpop.xlane.xlu0 %990
        %v992 = vsel %vm351, %v905, 0.0
        %v993 = vsel %vm351, %v907, 0.0
        %v994 = vadd.f32 %v992, %v993
        %995 = vadd.xlane.f32.xlu0 %v994
        %v996 = vpop.xlane.xlu0 %995
        %v997 = vrcp.pop %v996
        %v998 = vmul.f32 %v991, %v997
        %v1001 = vunpack.c.l.s4 839922192
        %v1002 = vunpack.c.0.s8 %v1001
        %v1003 = vlaneseq
        %v1004 = vshrl.u32 %v1003, 7
        %v1005 = vsub.s32 %v1002, %v1004
        %v1006 = vrot.slane %v998, %v1005
        %v1008 = vadd.f32 %v331, %v1006
        %1009 = vst [vmem:[%s325] sm:$0xff] %v1008
        %s1010 = sand.u32 %s225, 1
        %s1011 = scalar_lea.sflag [#allocation3], %s1010
        %s1012 = sand.u32 %s225, 1
        %s1013 = smul.addr %s1012, 8
        %s1014 = scalar_lea.vmem [#allocation2], %s1013
        // Predicated region
        $region57: #{tpu_custom_call.1} parent=55 // pred_check
          %p1015 = pneg %p235
        $region58: #{tpu_custom_call.1} parent=55 // pred_check_branch
          %1017 = sbr.rel (%p1015) target = $region60
        $region59: #{tpu_custom_call.1} parent=55 // pred_region
          %s1019 = ssub.s32 128, 128
          %1020 = vsyncadd %s1011, %s1019
          %s1021 = smul.addr %s23, 2
          %s1022 = smul.addr %s1021, 64
          %s1023 = scalar_lea.hbm %s9, %s1022
          %s1025 = sshll.u32 %s1014, 4
          %s1026 = int_to_ptr.vmem [resolvable:$true] %s1025
          %1028 = dma.vmem_to_hbm [thread:$0]  %s1026, 128, %s1023, %s1011
        $region60: #{tpu_custom_call.1} parent=55 // pred_fallthru
          _
      $region56: #{tpu_custom_call.1} parent=5 // pred_fallthru
        _
      %p1029 = scmp.le.s32.totalorder 2, %s18
      // Predicated region
      $region61: #{tpu_custom_call.1} parent=5 // pred_check
        %p1030 = pneg %p1029
      $region62: #{tpu_custom_call.1} parent=5 // pred_check_branch
        %1032 = sbr.rel (%p1030) target = $region64
      $region63: #{tpu_custom_call.1} parent=5 // pred_region
        %s1033 = ssub.s32 %s18, 2
        // Predicated region
        $region65: #{tpu_custom_call.1} parent=63 // pred_check
          %p1034 = pneg %p241
        $region66: #{tpu_custom_call.1} parent=63 // pred_check_branch
          %1036 = sbr.rel (%p1034) target = $region68
        $region67: #{tpu_custom_call.1} parent=63 // pred_region
          %s1037 = sand.u32 %s226, 1
          %s1038 = scalar_lea.sflag [#allocation3], %s1037
          %s1039 = sand.u32 %s226, 1
          %s1040 = smul.addr %s1039, 8
          %s1041 = scalar_lea.vmem [#allocation2], %s1040
          %1042 = dma.done %s1038, 128
        $region68: #{tpu_custom_call.1} parent=63 // pred_fallthru
          _
      $region64: #{tpu_custom_call.1} parent=5 // pred_fallthru
        _
    $region6: #{tpu_custom_call.1} parent=1 // loop_footer
      %s22 = sadd.s32 1, %s18
    $region7: #{tpu_custom_call.1} parent=1 // loop_footer_branch
      %17 = sbr.rel target = $region3
    $region8: #{tpu_custom_call.1} parent=1 // loop_exit
      _
    %1043 = vsyncpa [#allocation3], 1
    %s1044 = scalar_lea.sflag [#allocation3], 1
    %1045 = vsyncpa %s1044, 1

</llo_original>
